<compile_context>
chip_gen: v7x
topology: tpu7x:2x2x1
jax: 0.10.0
libtpu: 0.0.40
codegen_flags: <defaults>
</compile_context>

<pallas_src>
import functools
import math

import jax
import jax.numpy as jnp
from jax.experimental import pallas as pl
from jax.experimental.pallas import tpu as pltpu


_TARGET_TILE_BYTES = 1 * 1024 * 1024  # ~1 MiB per input tile; x3 arrays x2 buffers
                                      # stays well inside every chip's scoped VMEM.


def _pe_dropout_kernel(seed_ref, x_ref, pe_ref, o_ref, *, p_drop, train, n_per_batch):
    """One (row-tile, batch-tile) block: add positional encoding, optional dropout.

    x_ref/o_ref: VMEM tiles of shape (BB, TR, L); pe_ref: (1, TR, L) (broadcast
    over the leading batch dim).  seed_ref: SMEM scalar-prefetch int32 seed.
    """
    y = x_ref[...] + pe_ref[...]  # broadcast over leading (batch) dim, in x.dtype

    if train and p_drop > 0.0:
        bb, tr, ll = o_ref.shape
        shape = (bb, tr, ll)
        # Global element index -> counter-based hash -> uint32 threshold compare.
        b0 = pl.program_id(1) * bb
        r0 = pl.program_id(0) * tr
        b_idx = b0 + jax.lax.broadcasted_iota(jnp.int32, shape, 0)
        r_idx = r0 + jax.lax.broadcasted_iota(jnp.int32, shape, 1)
        c_idx = jax.lax.broadcasted_iota(jnp.int32, shape, 2)
        flat = (b_idx * n_per_batch + r_idx * ll + c_idx).astype(jnp.uint32)

        seed_u = seed_ref[0].astype(jnp.uint32)
        # murmur3-style finalizer keyed on (seed, global element index)
        h = flat + seed_u * jnp.uint32(0x9E3779B1)
        h = h ^ (h >> 16)
        h = h * jnp.uint32(0x85EBCA6B)
        h = h ^ (h >> 13)
        h = h * jnp.uint32(0xC2B2AE35)
        h = h ^ (h >> 16)

        # Integer threshold: P(drop) = thresh / 2^32 ≈ p_drop (no float mask math).
        thresh = jnp.uint32(min(int(round(p_drop * 2.0 ** 32)), 2 ** 32 - 1))
        keep = h >= thresh
        scale = jnp.asarray(1.0 / (1.0 - p_drop), dtype=y.dtype)
        y = jnp.where(keep, y * scale, jnp.zeros_like(y))

    o_ref[...] = y.astype(o_ref.dtype)


def make_positional_encoding_table(max_len, d_model, dtype=jnp.float32):
    """Builds the `pe` buffer exactly as the PyTorch __init__ does: [1, max_len, d_model]."""
    position = jnp.arange(max_len, dtype=jnp.float32)[:, None]                 # [max_len, 1]
    div_term = jnp.exp(
        jnp.arange(0, d_model, 2, dtype=jnp.float32) * (-math.log(10000.0) / d_model)
    )                                                                          # [d_model/2]
    pe = jnp.zeros((max_len, d_model), dtype=jnp.float32)
    pe = pe.at[:, 0::2].set(jnp.sin(position * div_term))
    pe = pe.at[:, 1::2].set(jnp.cos(position * div_term))
    return pe[None].astype(dtype)                                              # [1, max_len, d_model]


def _choose_rows(n_rows, n_lanes, itemsize, target_bytes=_TARGET_TILE_BYTES):
    """Pick a row-tile size: multiple of 8 that divides n_rows (or n_rows itself),
    sized so one tile is ~target_bytes."""
    max_rows = max(8, target_bytes // (n_lanes * itemsize))
    if n_rows <= max_rows:
        return n_rows
    best = 0
    for cand in range(8, int(max_rows) + 1, 8):
        if n_rows % cand == 0:
            best = cand
    return best if best > 0 else n_rows


def positional_encoding_forward(x, pe, *, p_drop=0.1, train=False, seed=0):
    """x: [B, S, D]; pe: [1, max_len, D] with max_len >= S."""
    B, S, D = x.shape
    pe_s = pe[:, :S, :].astype(x.dtype)            # [1, S, D], table slice, x's dtype
    N = S * D

    # Lane-dense layout: flatten the per-batch slab to rows of 128 lanes if possible.
    if N % 128 == 0:
        L = 128
        R = N // 128
    else:
        L = D
        R = S
    x3 = x.reshape(B, R, L)
    pe3 = pe_s.reshape(1, R, L)

    itemsize = x.dtype.itemsize
    TR = _choose_rows(R, L, itemsize)
    # Tiny-problem fast path: fold the whole batch into one block / one grid step.
    BB = B if (TR == R and B * R * L * itemsize <= _TARGET_TILE_BYTES) else 1
    grid = (R // TR, B // BB)                      # batch innermost -> pe tile stays resident

    seeds = jnp.asarray([seed], dtype=jnp.int32)
    kernel = functools.partial(
        _pe_dropout_kernel, p_drop=float(p_drop), train=bool(train), n_per_batch=N
    )

    out = pl.pallas_call(
        kernel,
        out_shape=jax.ShapeDtypeStruct((B, R, L), x.dtype),
        grid_spec=pltpu.PrefetchScalarGridSpec(
            num_scalar_prefetch=1,                  # int32 seed lands in SMEM
            grid=grid,
            in_specs=[
                # x tile: (BB, TR, L)
                pl.BlockSpec((BB, TR, L), lambda r, b, sref: (b, r, 0)),
                # pe tile: broadcast over batch; block index constant across the
                # inner batch axis -> fetched once per row tile, not per batch row.
                pl.BlockSpec((1, TR, L), lambda r, b, sref: (0, r, 0)),
            ],
            out_specs=pl.BlockSpec((BB, TR, L), lambda r, b, sref: (b, r, 0)),
        ),
        compiler_params=pltpu.CompilerParams(
            dimension_semantics=("parallel", "arbitrary")),
    )(seeds, x3, pe3)

    return out.reshape(B, S, D)


if __name__ == "__main__":
    # Small shapes consistent with the module: batch=2, seq=8, d_model=32.
    B, S, D = 2, 8, 32
    MAX_LEN = 5000
    P_DROP = 0.1

    key = jax.random.PRNGKey(0)
    x = jax.random.normal(key, (B, S, D), dtype=jnp.float32)
    pe = make_positional_encoding_table(MAX_LEN, D, dtype=jnp.float32)

    # --- eval mode (dropout is identity): must match the reference exactly ---
    y_eval = jax.block_until_ready(
        positional_encoding_forward(x, pe, p_drop=P_DROP, train=False)
    )
    y_ref = x + pe[:, :S]
    assert y_eval.shape == (B, S, D)
    assert jnp.allclose(y_eval, y_ref, atol=1e-6, rtol=1e-6), "eval-mode mismatch"

    # --- train mode: exercises the in-kernel hash-RNG dropout path ---
    # (RNG stream differs from torch by construction; check semantics only.)
    y_train = jax.block_until_ready(
        positional_encoding_forward(x, pe, p_drop=P_DROP, train=True, seed=1234)
    )
    assert y_train.shape == (B, S, D)
    dropped = y_train == 0.0
    kept_match = jnp.where(
        dropped, True, jnp.isclose(y_train, y_ref / (1.0 - P_DROP), atol=1e-5)
    )
    assert bool(jnp.all(kept_match)), "train-mode kept values incorrectly scaled"

    print("KERNEL_OK")
</pallas_src>

<mosaic_0001>
module attributes {stable_mosaic.version = 11 : i64} {
  func.func @_pe_dropout_kernel(%arg0: i32, %arg1: i32, %arg2: memref<1xi32, #tpu.memory_space<smem>>, %arg3: memref<2x2x128xf32, #tpu.memory_space<vmem>>, %arg4: memref<1x2x128xf32, #tpu.memory_space<vmem>>, %arg5: memref<2x2x128xf32, #tpu.memory_space<vmem>>) attributes {dimension_semantics = [#tpu.dimension_semantics<parallel>, #tpu.dimension_semantics<arbitrary>], iteration_bounds = array<i64: 1, 1>, scalar_prefetch = 1 : i64, scratch_operands = 0 : i64, tpu.core_type = #tpu.core_type<tc>, window_params = [{transform_indices = @transform_0, window_bounds = array<i64: 2, 2, 128>}, {transform_indices = @transform_1, window_bounds = array<i64: 1, 2, 128>}, {transform_indices = @transform_2, window_bounds = array<i64: 2, 2, 128>}]} {
    %c0 = arith.constant 0 : index
    %c0_0 = arith.constant 0 : index
    %c0_1 = arith.constant 0 : index
    %0 = vector.load %arg3[%c0, %c0_0, %c0_1] : memref<2x2x128xf32, #tpu.memory_space<vmem>>, vector<2x2x128xf32>
    %c0_2 = arith.constant 0 : index
    %c0_3 = arith.constant 0 : index
    %c0_4 = arith.constant 0 : index
    %1 = vector.load %arg4[%c0_2, %c0_3, %c0_4] : memref<1x2x128xf32, #tpu.memory_space<vmem>>, vector<1x2x128xf32>
    %2 = vector.broadcast %1 : vector<1x2x128xf32> to vector<2x2x128xf32>
    %3 = arith.addf %0, %2 : vector<2x2x128xf32>
    %c0_5 = arith.constant 0 : index
    %c0_6 = arith.constant 0 : index
    %c0_7 = arith.constant 0 : index
    %4 = vector.load %arg5[%c0_5, %c0_6, %c0_7] : memref<2x2x128xf32, #tpu.memory_space<vmem>>, vector<2x2x128xf32>
    tpu.vector_store %arg5[%c0_5, %c0_6, %c0_7], %3 {strides = array<i32>} : memref<2x2x128xf32, #tpu.memory_space<vmem>>, vector<2x2x128xf32>,
    return
  }
  func.func @transform_0(%arg0: i32, %arg1: i32, %arg2: memref<1xi32, #tpu.memory_space<smem>>) -> (i32, i32, i32) {
    %c0_i32 = arith.constant 0 : i32
    %c0_i32_0 = arith.constant 0 : i32
    return %arg1, %arg0, %c0_i32 : i32, i32, i32
  }
  func.func @transform_1(%arg0: i32, %arg1: i32, %arg2: memref<1xi32, #tpu.memory_space<smem>>) -> (i32, i32, i32) {
    %c0_i32 = arith.constant 0 : i32
    %c0_i32_0 = arith.constant 0 : i32
    %c0_i32_1 = arith.constant 0 : i32
    return %c0_i32, %arg0, %c0_i32_0 : i32, i32, i32
  }
  func.func @transform_2(%arg0: i32, %arg1: i32, %arg2: memref<1xi32, #tpu.memory_space<smem>>) -> (i32, i32, i32) {
    %c0_i32 = arith.constant 0 : i32
    %c0_i32_0 = arith.constant 0 : i32
    return %arg1, %arg0, %c0_i32 : i32, i32, i32
  }
}

</mosaic_0001>

<llo_original>
// kernel: tpu_custom_call.1
$region0: #{tpu_custom_call.1}
  #allocation0 [shape = 'u32[]', space=smem, size = 0x4, offset = 0x4, fixed_abs, tag = 'smem constant byte address 0x4 - core index']
  #allocation1 [shape = 'u32[144,128]{1,0:T(1,128)}', space=vmem, size = 0x12000, scoped, tag = 'internal scratch']
  #allocation2 [shape = 's32[1]{0}', space=sflag, size = 0x4, scoped, tag = 'scoped memory for tpu_custom_call.1']
  #allocation3 [shape = 's32[1]{0:T(128)S(6)}', space=smem, size = 0x200, scoped, tag = 'prefetched SMEM operand 0']
  %s0 = inlined_call_operand.<no memory space> [shape: s32[1], index: 0, kind: input, shape index: {}]
  %s1 = inlined_call_operand.hbm [shape: f32[2,2,128], index: 1, kind: input, shape index: {}]
  %s2 = inlined_call_operand.vmem [shape: f32[1,2,128], index: 2, kind: input, shape index: {}]
  %s3 = inlined_call_operand.hbm [shape: f32[2,2,128], index: 3, kind: output, shape index: {}]
  %s4 = sld [smem:[#allocation0]]
  $region22: #{tpu_custom_call.1} parent=0
    _
  %s6 = ssub.s32 1, %s4
  %s7 = scalar_select 0, %s6, %s4
  %8 = sst [smem:[#allocation3]] %s0
  $region1: #{tpu_custom_call.1} parent=0
    #allocation4 [shape = 'u8[2048]{0}', space=vmem, size = 0x800, scoped, tag = 'input window, operand 1, single buffered']
    #allocation5 [shape = 's32[1]{0}', space=sflag, size = 0x4, scoped, tag = 'scoped memory for tpu_custom_call.1']
    #allocation6 [shape = 's32[1]{0}', space=sflag, size = 0x4, scoped, tag = 'scoped memory for tpu_custom_call.1']
    #allocation7 [shape = 'u8[2048]{0}', space=vmem, size = 0x800, scoped, tag = 'output window, operand 0, single buffered']
    %9 = vsyncpa [#allocation5], 0
    %10 = vsyncpa [#allocation6], 0
    // Predicated region
    $region2: #{tpu_custom_call.1} parent=1 // pred_check
      _
    $region3: #{tpu_custom_call.1} parent=1 // pred_check_branch
      %12 = sbr.rel (0) target = $region5
    $region4: #{tpu_custom_call.1} parent=1 // pred_region
      %s14 = ssub.s32 64, 64
      %15 = vsyncadd [#allocation5], %s14
      %s16 = sshll.u32 [#allocation4], 4
      %s17 = int_to_ptr.vmem [resolvable:$true] %s16
      %22 = dma.hbm_to_vmem [thread:$0]  %s1, 64, %s17, [#allocation5], 32, 32, 2
    $region5: #{tpu_custom_call.1} parent=1 // pred_fallthru
      _
    // Predicated region
    $region6: #{tpu_custom_call.1} parent=1 // pred_check
      _
    $region7: #{tpu_custom_call.1} parent=1 // pred_check_branch
      %24 = sbr.rel (0) target = $region9
    $region8: #{tpu_custom_call.1} parent=1 // pred_region
      _
    $region9: #{tpu_custom_call.1} parent=1 // pred_fallthru
      _
    // Predicated region
    $region10: #{tpu_custom_call.1} parent=1 // pred_check
      _
    $region11: #{tpu_custom_call.1} parent=1 // pred_check_branch
      %26 = sbr.rel (0) target = $region13
    $region12: #{tpu_custom_call.1} parent=1 // pred_region
      %27 = dma.done [#allocation5], 64
    $region13: #{tpu_custom_call.1} parent=1 // pred_fallthru
      _
    %v28 = vld [vmem:[#allocation4] sm:$0x3]
    %v29 = vld [vmem:[#allocation4 + $0x2] sm:$0x3]
    %v30 = vld [vmem:[%s2] sm:$0x3]
    %v31 = vadd.f32 %v28, %v30
    %v32 = vadd.f32 %v29, %v30
    %33 = vst [vmem:[#allocation7] sm:$0x3] %v31
    %34 = vst [vmem:[#allocation7 + $0x2] sm:$0x3] %v32
    // Predicated region
    $region14: #{tpu_custom_call.1} parent=1 // pred_check
      _
    $region15: #{tpu_custom_call.1} parent=1 // pred_check_branch
      %36 = sbr.rel (0) target = $region17
    $region16: #{tpu_custom_call.1} parent=1 // pred_region
      %s38 = ssub.s32 64, 64
      %39 = vsyncadd [#allocation6], %s38
      %s40 = sshll.u32 [#allocation7], 4
      %s41 = int_to_ptr.vmem [resolvable:$true] %s40
      %46 = dma.vmem_to_hbm [thread:$0]  %s41, 64, %s3, [#allocation6], 32, 32, 2
    $region17: #{tpu_custom_call.1} parent=1 // pred_fallthru
      _
    // Predicated region
    $region18: #{tpu_custom_call.1} parent=1 // pred_check
      _
    $region19: #{tpu_custom_call.1} parent=1 // pred_check_branch
      %48 = sbr.rel (0) target = $region21
    $region20: #{tpu_custom_call.1} parent=1 // pred_region
      %49 = dma.done [#allocation6], 64
    $region21: #{tpu_custom_call.1} parent=1 // pred_fallthru
      _
    %50 = vsyncpa [#allocation5], 1
    %51 = vsyncpa [#allocation6], 1

</llo_original>
